<compile_context>
chip_gen: v7x
topology: tpu7x:2x2x1
jax: 0.10.0
libtpu: 0.0.40
codegen_flags: <defaults>
</compile_context>

<pallas_src>
from functools import partial

import jax
import jax.numpy as jnp
from jax.experimental import pallas as pl
from jax.experimental.pallas import tpu as pltpu


def _round_up(n: int, m: int) -> int:
    return ((n + m - 1) // m) * m


def _policy_kernel(x_ref, w1_ref, b1_ref, w2_ref, b2_ref, out_ref):
    # One batch tile per grid step; weights/biases are VMEM-resident.
    mm_dtype = w1_ref.dtype                                   # bf16 (or f32) matmul operands
    x = x_ref[...].astype(mm_dtype)                           # (TB, S)  -- S unpadded
    z1 = jnp.dot(x, w1_ref[...],
                 preferred_element_type=jnp.float32)          # (TB, Hp) f32 accumulation
    z1 = z1 + b1_ref[...]                                     # f32 bias
    a1 = jnp.maximum(z1, 0.0)                                 # ReLU
    z2 = jnp.dot(a1.astype(mm_dtype), w2_ref[...],
                 preferred_element_type=jnp.float32)          # (TB, Ap) f32 accumulation
    z2 = z2 + b2_ref[...]                                     # padded action cols ~ -1e30
    # Numerically-stable softmax along the lane (action) axis, all in f32.
    m = jnp.max(z2, axis=1, keepdims=True)
    e = jnp.exp(z2 - m)                                       # padded cols -> exactly 0
    denom = jnp.sum(e, axis=1, keepdims=True)
    probs = e / denom                                         # exact division: rows sum to 1
    out_ref[...] = probs[:, : out_ref.shape[1]]               # store only the real A columns


def pad_params(w1, b1, w2, b2, *, matmul_dtype=jnp.bfloat16):
    """Pad params once (hoisted out of the per-step forward).

    w1: (n_states, n_hidden), w2: (n_hidden, n_actions) stored (in, out) so the
    kernel does plain x @ W (same math as PyTorch's x @ W.T).  Hidden/action
    dims are padded to multiples of 128; padded action-logit columns get a
    -1e30 bias so softmax assigns them exactly 0.  Weights may be cast to bf16
    (halves their VMEM/DMA footprint); biases stay f32.
    """
    S, H = w1.shape
    H2, A = w2.shape
    assert H2 == H and b1.shape == (1, H) and b2.shape == (1, A)
    Hp = _round_up(H, 128)
    Ap = _round_up(A, 128)
    w1_p = jnp.zeros((S, Hp), matmul_dtype).at[:, :H].set(w1.astype(matmul_dtype))
    b1_p = jnp.zeros((1, Hp), jnp.float32).at[:, :H].set(b1.astype(jnp.float32))
    w2_p = jnp.zeros((Hp, Ap), matmul_dtype).at[:H, :A].set(w2.astype(matmul_dtype))
    b2_p = jnp.full((1, Ap), -1e30, jnp.float32).at[:, :A].set(b2.astype(jnp.float32))
    return w1_p, b1_p, w2_p, b2_p


@partial(jax.jit, static_argnames=("n_actions",))
def policy_forward(x, w1_p, b1_p, w2_p, b2_p, *, n_actions):
    """x: (B, n_states) f32; padded params from pad_params().
    Returns softmax action probabilities (B, n_actions) f32."""
    x = x.astype(jnp.float32)                     # torch.from_numpy(x).float() parity
    B, S = x.shape
    Hp = w1_p.shape[1]
    Ap = w2_p.shape[1]
    A = n_actions
    assert w1_p.shape[0] == S and w2_p.shape[0] == Hp and A <= Ap

    # Batch tile: multiple of 8 sublanes (or the full batch when B <= 8),
    # capped at 1024, with >= 2 grid steps when B >= 16 so the "parallel"
    # batch axis can shard across both v7x TensorCores.  No batch padding:
    # Pallas masks the ragged final block's stores.
    if B <= 8:
        TB = B
    else:
        TB = min(1024, _round_up(B, 8))
        TB = min(TB, max(8, _round_up(pl.cdiv(B, 2), 8)))
    grid = (pl.cdiv(B, TB),)

    itemsize_w = jnp.dtype(w1_p.dtype).itemsize
    flops = 2 * B * (S * Hp + Hp * Ap)
    bytes_accessed = (4 * B * S + itemsize_w * (S * Hp + Hp * Ap)
                      + 4 * (Hp + Ap) + 4 * B * A)

    return pl.pallas_call(
        _policy_kernel,
        out_shape=jax.ShapeDtypeStruct((B, A), jnp.float32),
        grid=grid,
        in_specs=[
            pl.BlockSpec((TB, S), lambda i: (i, 0)),    # x: batch-tiled, unpadded S
            pl.BlockSpec((S, Hp), lambda i: (0, 0)),    # w1: VMEM-resident
            pl.BlockSpec((1, Hp), lambda i: (0, 0)),    # b1: resident
            pl.BlockSpec((Hp, Ap), lambda i: (0, 0)),   # w2: resident
            pl.BlockSpec((1, Ap), lambda i: (0, 0)),    # b2: resident (pad cols -1e30)
        ],
        out_specs=pl.BlockSpec((TB, A), lambda i: (i, 0)),  # real action count only
        compiler_params=pltpu.CompilerParams(
            dimension_semantics=("parallel",),          # shard batch across TCs (v7x)
        ),
        cost_estimate=pl.CostEstimate(
            flops=flops,
            transcendentals=B * Ap,
            bytes_accessed=bytes_accessed,
        ),
    )(x, w1_p, b1_p, w2_p, b2_p)


def init_params(key, n_states, n_actions, n_hidden=64):
    """PyTorch-Linear-style init (uniform +-1/sqrt(fan_in)); weights stored (in, out)."""
    k1, k2, k3, k4 = jax.random.split(key, 4)
    bound1 = 1.0 / jnp.sqrt(jnp.float32(n_states))
    bound2 = 1.0 / jnp.sqrt(jnp.float32(n_hidden))
    w1 = jax.random.uniform(k1, (n_states, n_hidden), jnp.float32, -bound1, bound1)
    b1 = jax.random.uniform(k2, (1, n_hidden), jnp.float32, -bound1, bound1)
    w2 = jax.random.uniform(k3, (n_hidden, n_actions), jnp.float32, -bound2, bound2)
    b2 = jax.random.uniform(k4, (1, n_actions), jnp.float32, -bound2, bound2)
    return w1, b1, w2, b2


if __name__ == "__main__":
    # Small shapes consistent with the module (CartPole-ish policy).
    batch, n_states, n_hidden, n_actions = 4, 8, 64, 6

    key = jax.random.PRNGKey(0)
    kx, kp = jax.random.split(key)
    x = jax.random.normal(kx, (batch, n_states), jnp.float32)
    w1, b1, w2, b2 = init_params(kp, n_states, n_actions, n_hidden)

    # Pad / cast weights ONCE (hoisted out of the per-step forward path).
    w1_p, b1_p, w2_p, b2_p = pad_params(w1, b1, w2, b2, matmul_dtype=jnp.bfloat16)

    aprob = policy_forward(x, w1_p, b1_p, w2_p, b2_p, n_actions=n_actions)
    aprob = jax.block_until_ready(aprob)

    # Pure-JAX f32 reference of the module's math.
    z1 = jnp.maximum(x @ w1 + b1, 0.0)
    z2 = z1 @ w2 + b2
    ref = jax.nn.softmax(z2, axis=1)

    assert aprob.shape == (batch, n_actions)
    # bf16 matmul operands (f32 accumulation/softmax) -> small prob error budget.
    assert jnp.allclose(aprob, ref, atol=2e-2, rtol=2e-2)
    # Exact-division softmax: every row sums to 1 within f32 rounding.
    assert jnp.allclose(jnp.sum(aprob, axis=1), 1.0, atol=1e-5)

    print("KERNEL_OK")
</pallas_src>

<mosaic_0001>
module attributes {stable_mosaic.version = 11 : i64} {
  func.func @_policy_kernel(%arg0: i32, %arg1: memref<4x8xf32, #tpu.memory_space<vmem>>, %arg2: memref<8x128xbf16, #tpu.memory_space<vmem>>, %arg3: memref<1x128xf32, #tpu.memory_space<vmem>>, %arg4: memref<128x128xbf16, #tpu.memory_space<vmem>>, %arg5: memref<1x128xf32, #tpu.memory_space<vmem>>, %arg6: memref<4x6xf32, #tpu.memory_space<vmem>>) attributes {dimension_semantics = [#tpu.dimension_semantics<parallel>], iteration_bounds = array<i64: 1>, scalar_prefetch = 0 : i64, scratch_operands = 0 : i64, tpu.core_type = #tpu.core_type<tc>, window_params = [{transform_indices = @transform_0, window_bounds = array<i64: 4, 8>}, {pipeline_mode = #tpu.pipeline_mode<synchronous>, transform_indices = @transform_1, window_bounds = array<i64: 8, 128>}, {pipeline_mode = #tpu.pipeline_mode<synchronous>, transform_indices = @transform_2, window_bounds = array<i64: 1, 128>}, {pipeline_mode = #tpu.pipeline_mode<synchronous>, transform_indices = @transform_3, window_bounds = array<i64: 128, 128>}, {pipeline_mode = #tpu.pipeline_mode<synchronous>, transform_indices = @transform_4, window_bounds = array<i64: 1, 128>}, {transform_indices = @transform_5, window_bounds = array<i64: 4, 6>}]} {
    %c0 = arith.constant 0 : index
    %c0_0 = arith.constant 0 : index
    %0 = vector.load %arg1[%c0, %c0_0] : memref<4x8xf32, #tpu.memory_space<vmem>>, vector<4x8xf32>
    %1 = arith.truncf %0 : vector<4x8xf32> to vector<4x8xbf16>
    %c0_1 = arith.constant 0 : index
    %c0_2 = arith.constant 0 : index
    %2 = vector.load %arg2[%c0_1, %c0_2] : memref<8x128xbf16, #tpu.memory_space<vmem>>, vector<8x128xbf16>
    %cst = arith.constant dense<0.000000e+00> : vector<4x128xf32>
    %3 = tpu.matmul %1, %2, %cst {dimension_numbers = #tpu.dot_dimension_numbers<[1], [0], [0], [1], [0, 0, 1, 1], [], []>} : vector<4x8xbf16>, vector<8x128xbf16>, vector<4x128xf32> -> vector<4x128xf32>
    %c0_3 = arith.constant 0 : index
    %c0_4 = arith.constant 0 : index
    %4 = vector.load %arg3[%c0_3, %c0_4] : memref<1x128xf32, #tpu.memory_space<vmem>>, vector<1x128xf32>
    %5 = vector.broadcast %4 : vector<1x128xf32> to vector<4x128xf32>
    %6 = arith.addf %3, %5 : vector<4x128xf32>
    %cst_5 = arith.constant 0.000000e+00 : f32
    %7 = vector.broadcast %cst_5 : f32 to vector<4x128xf32>
    %8 = arith.maximumf %6, %7 : vector<4x128xf32>
    %9 = arith.truncf %8 : vector<4x128xf32> to vector<4x128xbf16>
    %c0_6 = arith.constant 0 : index
    %c0_7 = arith.constant 0 : index
    %10 = vector.load %arg4[%c0_6, %c0_7] : memref<128x128xbf16, #tpu.memory_space<vmem>>, vector<128x128xbf16>
    %cst_8 = arith.constant dense<0.000000e+00> : vector<4x128xf32>
    %11 = tpu.matmul %9, %10, %cst_8 {dimension_numbers = #tpu.dot_dimension_numbers<[1], [0], [0], [1], [0, 0, 1, 1], [], []>} : vector<4x128xbf16>, vector<128x128xbf16>, vector<4x128xf32> -> vector<4x128xf32>
    %c0_9 = arith.constant 0 : index
    %c0_10 = arith.constant 0 : index
    %12 = vector.load %arg5[%c0_9, %c0_10] : memref<1x128xf32, #tpu.memory_space<vmem>>, vector<1x128xf32>
    %13 = vector.broadcast %12 : vector<1x128xf32> to vector<4x128xf32>
    %14 = arith.addf %11, %13 : vector<4x128xf32>
    %cst_11 = arith.constant dense<0xFF800000> : vector<4xf32>
    %15 = vector.multi_reduction <maximumf>, %14, %cst_11 [1] : vector<4x128xf32> to vector<4xf32>
    %16 = vector.shape_cast %15 : vector<4xf32> to vector<4x1xf32>
    %17 = vector.broadcast %16 : vector<4x1xf32> to vector<4x128xf32>
    %18 = arith.subf %14, %17 : vector<4x128xf32>
    %19 = math.exp %18 : vector<4x128xf32>
    %cst_12 = arith.constant dense<0.000000e+00> : vector<4xf32>
    %20 = vector.multi_reduction <add>, %19, %cst_12 [1] : vector<4x128xf32> to vector<4xf32>
    %21 = vector.shape_cast %20 : vector<4xf32> to vector<4x1xf32>
    %22 = vector.broadcast %21 : vector<4x1xf32> to vector<4x128xf32>
    %23 = arith.divf %19, %22 : vector<4x128xf32>
    %24 = vector.extract_strided_slice %23 {offsets = [0, 0], sizes = [4, 6], strides = [1, 1]} : vector<4x128xf32> to vector<4x6xf32>
    %c0_13 = arith.constant 0 : index
    %c0_14 = arith.constant 0 : index
    %25 = vector.load %arg6[%c0_13, %c0_14] : memref<4x6xf32, #tpu.memory_space<vmem>>, vector<4x6xf32>
    tpu.vector_store %arg6[%c0_13, %c0_14], %24 {strides = array<i32>} : memref<4x6xf32, #tpu.memory_space<vmem>>, vector<4x6xf32>,
    return
  }
  func.func @transform_0(%arg0: i32) -> (i32, i32) {
    %c0_i32 = arith.constant 0 : i32
    %c0_i32_0 = arith.constant 0 : i32
    return %arg0, %c0_i32 : i32, i32
  }
  func.func @transform_1(%arg0: i32) -> (i32, i32) {
    %c0_i32 = arith.constant 0 : i32
    %c0_i32_0 = arith.constant 0 : i32
    %c0_i32_1 = arith.constant 0 : i32
    return %c0_i32, %c0_i32_0 : i32, i32
  }
  func.func @transform_2(%arg0: i32) -> (i32, i32) {
    %c0_i32 = arith.constant 0 : i32
    %c0_i32_0 = arith.constant 0 : i32
    %c0_i32_1 = arith.constant 0 : i32
    return %c0_i32, %c0_i32_0 : i32, i32
  }
  func.func @transform_3(%arg0: i32) -> (i32, i32) {
    %c0_i32 = arith.constant 0 : i32
    %c0_i32_0 = arith.constant 0 : i32
    %c0_i32_1 = arith.constant 0 : i32
    return %c0_i32, %c0_i32_0 : i32, i32
  }
  func.func @transform_4(%arg0: i32) -> (i32, i32) {
    %c0_i32 = arith.constant 0 : i32
    %c0_i32_0 = arith.constant 0 : i32
    %c0_i32_1 = arith.constant 0 : i32
    return %c0_i32, %c0_i32_0 : i32, i32
  }
  func.func @transform_5(%arg0: i32) -> (i32, i32) {
    %c0_i32 = arith.constant 0 : i32
    %c0_i32_0 = arith.constant 0 : i32
    return %arg0, %c0_i32 : i32, i32
  }
}

</mosaic_0001>

<llo_original>
// kernel: policy_forward.1
$region0: #{policy_forward.1}
  #allocation0 [shape = 'u32[]', space=smem, size = 0x4, offset = 0x4, fixed_abs, tag = 'smem constant byte address 0x4 - core index']
  #allocation1 [shape = 'u32[144,128]{1,0:T(1,128)}', space=vmem, size = 0x12000, scoped, tag = 'internal scratch']
  %s0 = inlined_call_operand.hbm [shape: f32[4,8], index: 0, kind: input, shape index: {}]
  %s1 = inlined_call_operand.hbm [shape: bf16[8,128], index: 1, kind: input, shape index: {}]
  %s2 = inlined_call_operand.vmem [shape: f32[1,128], index: 2, kind: input, shape index: {}]
  %s3 = inlined_call_operand.hbm [shape: bf16[128,128], index: 3, kind: input, shape index: {}]
  %s4 = inlined_call_operand.vmem [shape: f32[1,128], index: 4, kind: input, shape index: {}]
  %s5 = inlined_call_operand.hbm [shape: f32[4,6], index: 5, kind: output, shape index: {}]
  %s6 = sld [smem:[#allocation0]]
  $region42: #{policy_forward.1} parent=0
    _
  %s8 = ssub.s32 1, %s6
  %s9 = scalar_select 0, %s8, %s6
  $region1: #{policy_forward.1} parent=0
    #allocation2 [shape = 'u8[2048]{0}', space=vmem, size = 0x800, scoped, tag = 'input window, operand 0, single buffered']
    #allocation3 [shape = 's32[1]{0}', space=sflag, size = 0x4, scoped, tag = 'scoped memory for policy_forward.1']
    #allocation4 [shape = 's32[1]{0}', space=sflag, size = 0x4, scoped, tag = 'scoped memory for policy_forward.1']
    #allocation5 [shape = 'u8[2048]{0}', space=vmem, size = 0x800, scoped, tag = 'input window, operand 1, single buffered']
    #allocation6 [shape = 's32[1]{0}', space=sflag, size = 0x4, scoped, tag = 'scoped memory for policy_forward.1']
    #allocation7 [shape = 'u8[32768]{0}', space=vmem, size = 0x8000, scoped, tag = 'input window, operand 3, single buffered']
    #allocation8 [shape = 'u8[2048]{0}', space=vmem, size = 0x800, scoped, tag = 'output window, operand 0, single buffered']
    %10 = vsyncpa [#allocation3], 0
    %11 = vsyncpa [#allocation6], 0
    %12 = vsyncpa [#allocation4], 0
    // Predicated region
    $region2: #{policy_forward.1} parent=1 // pred_check
      _
    $region3: #{policy_forward.1} parent=1 // pred_check_branch
      %14 = sbr.rel (0) target = $region5
    $region4: #{policy_forward.1} parent=1 // pred_region
      %s16 = ssub.s32 64, 64
      %17 = vsyncadd [#allocation3], %s16
      %s19 = sshll.u32 [#allocation2], 4
      %s20 = int_to_ptr.vmem [resolvable:$true] %s19
      %22 = dma.hbm_to_vmem [thread:$0]  %s0, 64, %s20, [#allocation3]
    $region5: #{policy_forward.1} parent=1 // pred_fallthru
      _
    // Predicated region
    $region6: #{policy_forward.1} parent=1 // pred_check
      _
    $region7: #{policy_forward.1} parent=1 // pred_check_branch
      %24 = sbr.rel (0) target = $region9
    $region8: #{policy_forward.1} parent=1 // pred_region
      %s26 = ssub.s32 64, 64
      %27 = vsyncadd [#allocation6], %s26
      %s29 = sshll.u32 [#allocation5], 4
      %s30 = int_to_ptr.vmem [resolvable:$true] %s29
      %32 = dma.hbm_to_vmem [thread:$0]  %s1, 64, %s30, [#allocation6]
    $region9: #{policy_forward.1} parent=1 // pred_fallthru
      _
    // Predicated region
    $region10: #{policy_forward.1} parent=1 // pred_check
      _
    $region11: #{policy_forward.1} parent=1 // pred_check_branch
      %34 = sbr.rel (0) target = $region13
    $region12: #{policy_forward.1} parent=1 // pred_region
      _
    $region13: #{policy_forward.1} parent=1 // pred_fallthru
      _
    // Predicated region
    $region14: #{policy_forward.1} parent=1 // pred_check
      _
    $region15: #{policy_forward.1} parent=1 // pred_check_branch
      %36 = sbr.rel (0) target = $region17
    $region16: #{policy_forward.1} parent=1 // pred_region
      %s38 = ssub.s32 1024, 1024
      %39 = vsyncadd [#allocation6], %s38
      %s40 = sshll.u32 [#allocation7], 4
      %s41 = int_to_ptr.vmem [resolvable:$true] %s40
      %46 = dma.hbm_to_vmem [thread:$0]  %s3, 1024, %s41, [#allocation6], 64, 64, 4
    $region17: #{policy_forward.1} parent=1 // pred_fallthru
      _
    // Predicated region
    $region18: #{policy_forward.1} parent=1 // pred_check
      _
    $region19: #{policy_forward.1} parent=1 // pred_check_branch
      %48 = sbr.rel (0) target = $region21
    $region20: #{policy_forward.1} parent=1 // pred_region
      _
    $region21: #{policy_forward.1} parent=1 // pred_fallthru
      _
    // Predicated region
    $region22: #{policy_forward.1} parent=1 // pred_check
      _
    $region23: #{policy_forward.1} parent=1 // pred_check_branch
      %50 = sbr.rel (0) target = $region25
    $region24: #{policy_forward.1} parent=1 // pred_region
      %51 = dma.done [#allocation3], 64
    $region25: #{policy_forward.1} parent=1 // pred_fallthru
      _
    // Predicated region
    $region26: #{policy_forward.1} parent=1 // pred_check
      _
    $region27: #{policy_forward.1} parent=1 // pred_check_branch
      %53 = sbr.rel (0) target = $region29
    $region28: #{policy_forward.1} parent=1 // pred_region
      %54 = dma.done [#allocation6], 64
    $region29: #{policy_forward.1} parent=1 // pred_fallthru
      _
    // Predicated region
    $region30: #{policy_forward.1} parent=1 // pred_check
      _
    $region31: #{policy_forward.1} parent=1 // pred_check_branch
      %56 = sbr.rel (0) target = $region33
    $region32: #{policy_forward.1} parent=1 // pred_region
      %57 = dma.done [#allocation6], 1024
    $region33: #{policy_forward.1} parent=1 // pred_fallthru
      _
    %v59 = vld [vmem:[#allocation2] sm:$0xf]
    %v60 = vpack.c.bf16 %v59, %v59
    %v61 = vld [vmem:[#allocation5] sm:$0xf]
    %v62 = vld [vmem:[%s2] sm:$0x1]
    %v64 = vlaneseq
    %v65 = vshrl.u32 %v64, 7
    %v66 = vsub.s32 0, %v65
    %v67 = vrot.slane %v62, %v66
    %vm69 = vcmask 64512
    %v71 = vsel %vm69, %v60, 0
    %vm73 = vcmask 1043456
    %v75 = vsel %vm73, %v61, 0
    %77 = vmatprep.subr.bf16.mxu0 0
    %78 = vmatpush1.bf16.msra.mxu0 %v75
    %79 = vmatprep.subr.bf16.mxu0 0
    %80 = vmatpush1.bf16.msra.mxu0 0
    %81 = vmatprep.subr.bf16.mxu0 0
    %82 = vmatpush1.bf16.msra.mxu0 0
    %83 = vmatprep.subr.bf16.mxu0 0
    %84 = vmatpush1.bf16.msra.mxu0 0
    %85 = vmatprep.subr.bf16.mxu0 0
    %86 = vmatpush1.bf16.msra.mxu0 0
    %87 = vmatprep.subr.bf16.mxu0 0
    %88 = vmatpush1.bf16.msra.mxu0 0
    %89 = vmatprep.subr.bf16.mxu0 0
    %90 = vmatpush1.bf16.msra.mxu0 0
    %91 = vmatprep.subr.bf16.mxu0 0
    %92 = vmatpush1.bf16.msra.mxu0 0
    %93 = vmatprep.subr.bf16.mxu0 0
    %94 = vmatpush1.bf16.msra.mxu0 0
    %95 = vmatprep.subr.bf16.mxu0 0
    %96 = vmatpush1.bf16.msra.mxu0 0
    %97 = vmatprep.subr.bf16.mxu0 0
    %98 = vmatpush1.bf16.msra.mxu0 0
    %99 = vmatprep.subr.bf16.mxu0 0
    %100 = vmatpush1.bf16.msra.mxu0 0
    %101 = vmatprep.subr.bf16.mxu0 0
    %102 = vmatpush1.bf16.msra.mxu0 0
    %103 = vmatprep.subr.bf16.mxu0 0
    %104 = vmatpush1.bf16.msra.mxu0 0
    %105 = vmatprep.subr.bf16.mxu0 0
    %106 = vmatpush1.bf16.msra.mxu0 0
    %107 = vmatprep.subr.bf16.mxu0 0
    %108 = vmatpush1.bf16.msra.mxu0 0
    %109 = vmatprep.mubr.bf16.mxu0 0
    %110 = vmatmul.mubr.bf16.gmra.mrb[0].mxu0 %v71
    %v111 = vpop.f32.mrb[0].mxu0
    %v112 = vadd.f32 %v67, %v111
    %v113 = vpop.f32.mrb[0].mxu0
    %v114 = vpop.f32.mrb[0].mxu0
    %v115 = vpop.f32.mrb[0].mxu0
    %116 = vdwg.mxu0
    %v117 = vmax.f32 %v112, 0.0
    %v118 = vpack.c.bf16 %v117, %v117
    %v119 = vld [vmem:[#allocation7] sm:$0xf]
    %v120 = vld [vmem:[#allocation7 + $0x4] sm:$0xf]
    %v121 = vld [vmem:[#allocation7 + $0x8] sm:$0xf]
    %v122 = vld [vmem:[#allocation7 + $0xc] sm:$0xf]
    %v123 = vld [vmem:[#allocation7 + $0x10] sm:$0xf]
    %v124 = vld [vmem:[#allocation7 + $0x14] sm:$0xf]
    %v125 = vld [vmem:[#allocation7 + $0x18] sm:$0xf]
    %v126 = vld [vmem:[#allocation7 + $0x1c] sm:$0xf]
    %v127 = vld [vmem:[#allocation7 + $0x20] sm:$0xf]
    %v128 = vld [vmem:[#allocation7 + $0x24] sm:$0xf]
    %v129 = vld [vmem:[#allocation7 + $0x28] sm:$0xf]
    %v130 = vld [vmem:[#allocation7 + $0x2c] sm:$0xf]
    %v131 = vld [vmem:[#allocation7 + $0x30] sm:$0xf]
    %v132 = vld [vmem:[#allocation7 + $0x34] sm:$0xf]
    %v133 = vld [vmem:[#allocation7 + $0x38] sm:$0xf]
    %v134 = vld [vmem:[#allocation7 + $0x3c] sm:$0xf]
    %v135 = vld [vmem:[%s4] sm:$0x1]
    %v137 = vlaneseq
    %v138 = vshrl.u32 %v137, 7
    %v139 = vsub.s32 0, %v138
    %v140 = vrot.slane %v135, %v139
    %v158 = vunpack.c.l.b16 %v119
    %v159 = vunpack.c.l.b16 %v120
    %v160 = vunpack.c.l.b16 %v121
    %v161 = vunpack.c.l.b16 %v122
    %v162 = vunpack.c.l.b16 %v123
    %v163 = vunpack.c.l.b16 %v124
    %v164 = vunpack.c.l.b16 %v125
    %v165 = vunpack.c.l.b16 %v126
    %v166 = vunpack.c.l.b16 %v127
    %v167 = vunpack.c.l.b16 %v128
    %v168 = vunpack.c.l.b16 %v129
    %v169 = vunpack.c.l.b16 %v130
    %v170 = vunpack.c.l.b16 %v131
    %v171 = vunpack.c.l.b16 %v132
    %v172 = vunpack.c.l.b16 %v133
    %v173 = vunpack.c.l.b16 %v134
    %v174 = vpack.c.b16 %v159, %v158
    %v175 = vpack.c.b16 %v161, %v160
    %v176 = vpack.c.b16 %v163, %v162
    %v177 = vpack.c.b16 %v165, %v164
    %v178 = vpack.c.b16 %v167, %v166
    %v179 = vpack.c.b16 %v169, %v168
    %v180 = vpack.c.b16 %v171, %v170
    %v181 = vpack.c.b16 %v173, %v172
    %190 = vmatprep.subr.bf16.mxu0 0
    %191 = vmatpush1.bf16.msra.mxu0 %v174
    %192 = vmatprep.subr.bf16.mxu0 0
    %193 = vmatpush1.bf16.msra.mxu0 %v175
    %194 = vmatprep.subr.bf16.mxu0 0
    %195 = vmatpush1.bf16.msra.mxu0 %v176
    %196 = vmatprep.subr.bf16.mxu0 0
    %197 = vmatpush1.bf16.msra.mxu0 %v177
    %198 = vmatprep.subr.bf16.mxu0 0
    %199 = vmatpush1.bf16.msra.mxu0 %v178
    %200 = vmatprep.subr.bf16.mxu0 0
    %201 = vmatpush1.bf16.msra.mxu0 %v179
    %202 = vmatprep.subr.bf16.mxu0 0
    %203 = vmatpush1.bf16.msra.mxu0 %v180
    %204 = vmatprep.subr.bf16.mxu0 0
    %205 = vmatpush1.bf16.msra.mxu0 %v181
    %206 = vmatprep.subr.bf16.mxu0 0
    %207 = vmatpush1.bf16.msra.mxu0 0
    %208 = vmatprep.subr.bf16.mxu0 0
    %209 = vmatpush1.bf16.msra.mxu0 0
    %210 = vmatprep.subr.bf16.mxu0 0
    %211 = vmatpush1.bf16.msra.mxu0 0
    %212 = vmatprep.subr.bf16.mxu0 0
    %213 = vmatpush1.bf16.msra.mxu0 0
    %214 = vmatprep.subr.bf16.mxu0 0
    %215 = vmatpush1.bf16.msra.mxu0 0
    %216 = vmatprep.subr.bf16.mxu0 0
    %217 = vmatpush1.bf16.msra.mxu0 0
    %218 = vmatprep.subr.bf16.mxu0 0
    %219 = vmatpush1.bf16.msra.mxu0 0
    %220 = vmatprep.subr.bf16.mxu0 0
    %221 = vmatpush1.bf16.msra.mxu0 0
    %222 = vmatprep.mubr.bf16.mxu0 0
    %223 = vmatmul.mubr.bf16.gmra.mrb[0].mxu0 %v118
    %v224 = vpop.f32.mrb[0].mxu0
    %v225 = vadd.f32 %v140, %v224
    %v226 = vpop.f32.mrb[0].mxu0
    %v227 = vpop.f32.mrb[0].mxu0
    %v228 = vpop.f32.mrb[0].mxu0
    %229 = vdwg.mxu0
    %v230 = vsel %vm73, %v225, -inf
    %231 = vmax.xlane.f32.xlu0 %v230
    %v232 = vpop.xlane.xlu0 %231
    %v233 = vsub.f32 %v225, %v232
    %v234 = vmul.f32 %v233, 1.442695
    %v235 = vpow.pop %v234
    %v236 = vsel %vm73, %v235, 0.0
    %237 = vadd.xlane.f32.xlu0 %v236
    %v238 = vpop.xlane.xlu0 %237
    %v239 = vrcp.pop %v238
    %v240 = vmul.f32 %v235, %v239
    %vm241 = vcmask 44032
    %242 = vst.msk [vmem:[#allocation8] sm:$0xf] %vm241, %v240
    // Predicated region
    $region34: #{policy_forward.1} parent=1 // pred_check
      _
    $region35: #{policy_forward.1} parent=1 // pred_check_branch
      %244 = sbr.rel (0) target = $region37
    $region36: #{policy_forward.1} parent=1 // pred_region
      %s246 = ssub.s32 64, 64
      %247 = vsyncadd [#allocation4], %s246
      %s249 = sshll.u32 [#allocation8], 4
      %s250 = int_to_ptr.vmem [resolvable:$true] %s249
      %252 = dma.vmem_to_hbm [thread:$0]  %s250, 64, %s5, [#allocation4]
    $region37: #{policy_forward.1} parent=1 // pred_fallthru
      _
    // Predicated region
    $region38: #{policy_forward.1} parent=1 // pred_check
      _
    $region39: #{policy_forward.1} parent=1 // pred_check_branch
      %254 = sbr.rel (0) target = $region41
    $region40: #{policy_forward.1} parent=1 // pred_region
      %255 = dma.done [#allocation4], 64
    $region41: #{policy_forward.1} parent=1 // pred_fallthru
      _
    %256 = vsyncpa [#allocation3], 1
    %257 = vsyncpa [#allocation6], 1
    %258 = vsyncpa [#allocation4], 1

</llo_original>
